<compile_context>
chip_gen: v7x
topology: tpu7x:2x2x1
jax: 0.10.0
libtpu: 0.0.40
codegen_flags: <defaults>
</compile_context>

<pallas_src>
import functools

import jax
import jax.numpy as jnp
from jax.experimental import pallas as pl
from jax.experimental.pallas import tpu as pltpu

EPS = 1e-5  # PyTorch nn.InstanceNorm2d default eps


# ---------------------------------------------------------------------------
# Kernels
# ---------------------------------------------------------------------------

def _cin_kernel_one_pass(gb_ref, x_ref, o_ref):
    """Single-pass kernel: one block holds tile_r full rows of (H*W)."""
    gb = gb_ref[...].astype(jnp.float32)          # (tile_r, 2)
    gamma = gb[:, 0:1]
    beta = gb[:, 1:2]

    x = x_ref[...].astype(jnp.float32)
    mean = jnp.mean(x, axis=-1, keepdims=True)
    # Centered variance; the (x - mean) temporary dies at the reduction —
    # the store below uses x directly (scale/shift folding), so no tile-sized
    # temp stays live across reduction + store.
    var = jnp.mean((x - mean) * (x - mean), axis=-1, keepdims=True)
    scale = gamma * jax.lax.rsqrt(var + EPS)
    shift = beta - mean * scale
    o_ref[...] = (x * scale + shift).astype(o_ref.dtype)


def _cin_kernel_two_pass(gb_ref, x_ref, o_ref, mu_ref, m2_ref, *,
                         tile_c, hw, n_chunks):
    """Streamed fallback for large H*W: grid = (rows, pass, hw_chunks).

    pass 0: chunk-wise centered mean/M2 (Chan combine) into VMEM scratch; on
    the last chunk the scratch is converted to (scale, shift).
    pass 1: re-stream the same chunks and apply scale/shift.
    NOTE: program_id / static constants are read ONLY at kernel top level —
    never inside pl.when bodies (lowering requirement)."""
    p = pl.program_id(1)
    j = pl.program_id(2)

    @pl.when(jnp.logical_and(p == 0, j == 0))
    def _():
        mu_ref[...] = jnp.zeros_like(mu_ref)
        m2_ref[...] = jnp.zeros_like(m2_ref)

    x = x_ref[...].astype(jnp.float32)

    @pl.when(p == 0)
    def _():
        c = jnp.float32(tile_c)
        n = j.astype(jnp.float32) * c            # elements seen before chunk
        n_new = n + c
        cm = jnp.sum(x, axis=-1, keepdims=True) / c                    # chunk mean
        cq = jnp.sum((x - cm) * (x - cm), axis=-1, keepdims=True)      # chunk M2
        delta = cm - mu_ref[...]
        mu_ref[...] = mu_ref[...] + delta * (c / n_new)
        m2_ref[...] = m2_ref[...] + cq + delta * delta * (n * c / n_new)

    @pl.when(jnp.logical_and(p == 0, j == n_chunks - 1))
    def _():
        gb = gb_ref[...].astype(jnp.float32)
        gamma = gb[:, 0:1]
        beta = gb[:, 1:2]
        mean = mu_ref[...]
        var = m2_ref[...] * jnp.float32(1.0 / hw)
        scale = gamma * jax.lax.rsqrt(var + EPS)
        shift = beta - mean * scale
        mu_ref[...] = scale          # reuse scratch for pass 1
        m2_ref[...] = shift

    @pl.when(p == 1)
    def _():
        o_ref[...] = (x * mu_ref[...] + m2_ref[...]).astype(o_ref.dtype)


# ---------------------------------------------------------------------------
# Tiling helpers
# ---------------------------------------------------------------------------

def _sublane_min(dtype):
    # 8 for 32-bit, 16 for bf16/f16, 32 for 8-bit dtypes.
    return max(8, 32 // jnp.dtype(dtype).itemsize)


def _row_tile_candidates(nc, sub_min):
    """Legal row-tile sizes: sub_min-multiples dividing NC, plus NC itself
    (a full-extent block dim is always legal)."""
    cands = [d for d in range(sub_min, nc + 1, sub_min) if nc % d == 0]
    if nc not in cands:
        cands.append(nc)
    return sorted(set(cands))


# ---------------------------------------------------------------------------
# Wrapper
# ---------------------------------------------------------------------------

def conditional_instance_norm_2d(x, t, emb_weight, *,
                                 vmem_budget_bytes=24 << 20,
                                 vmem_limit_bytes=32 << 20):
    """x: (N, C, H, W); t: (N,) int32; emb_weight: (num_emb, 2*C).

    Defaults are safe on v5e/v6e/v7x (v7x has only 64 MiB VMEM per core);
    on v5e/v6e both budgets can be raised further for slightly fewer steps.
    """
    N, C, H, W = x.shape
    HW = H * W
    NC = N * C

    # Embedding lookup (cheap glue in plain JAX); pack gamma/beta into one
    # (NC, 2) array, tiled per grid step below.
    emb = jnp.take(emb_weight, t, axis=0)                      # (N, 2*C)
    gamma = emb[:, :C].reshape(NC, 1)
    beta = emb[:, C:].reshape(NC, 1)
    gb = jnp.concatenate([gamma, beta], axis=-1).astype(jnp.float32)  # (NC, 2)

    x_flat = x.reshape(NC, HW)

    in_bytes = jnp.dtype(x.dtype).itemsize
    out_bytes = in_bytes
    sub_min = _sublane_min(x.dtype)
    row_cands = _row_tile_candidates(NC, sub_min)

    # True per-row working set for a (rows, HW) block: double-buffered input
    # and output plus ~2 block-sized f32 temporaries (upcast copy / fused
    # scale-shift product).
    per_row_ws = HW * (2 * in_bytes + 2 * out_bytes + 2 * 4)
    max_rows = max(0, vmem_budget_bytes // per_row_ws)

    viable = [d for d in row_cands if d <= max_rows]
    pref4 = [d for d in viable if NC // d >= 4]   # >=2 blocks per v7x core
    pref2 = [d for d in viable if NC // d >= 2]

    # Streamed two-pass feasibility: HW must split into >=2 lane-aligned chunks.
    col_cands = [c for c in range(128, HW, 128) if HW % c == 0]
    can_stream = bool(col_cands)

    if pref4 or pref2:
        tile_r = max(pref4) if pref4 else max(pref2)
        path_a = True
    elif can_stream:
        path_a = False        # never take a single-step Path A if we can stream
    elif viable:
        tile_r = max(viable)  # grid=(1,): correct but unpipelined (tiny inputs)
        path_a = True
    else:
        # Rows exceed the budget and HW is not 128-chunkable: take the smallest
        # row tile anyway (correctness over perf).
        # TODO(synk): pad HW to a 128-multiple + masked reduction (e.g. 28x28),
        # and lane-pack multiple instances for tiny HW (<128) feature maps.
        tile_r = min(row_cands)
        path_a = True

    if path_a:
        block_ws = tile_r * per_row_ws
        vmem_limit = max(vmem_limit_bytes, min(block_ws + (8 << 20), 128 << 20))
        grid = (NC // tile_r,)

        out_flat = pl.pallas_call(
            _cin_kernel_one_pass,
            out_shape=jax.ShapeDtypeStruct((NC, HW), x.dtype),
            grid_spec=pltpu.PrefetchScalarGridSpec(
                num_scalar_prefetch=0,
                grid=grid,
                in_specs=[
                    # Per-step gamma/beta tile: tiny DMA, fully pipeline-hidden.
                    pl.BlockSpec((tile_r, 2), lambda i: (i, 0)),
                    pl.BlockSpec((tile_r, HW), lambda i: (i, 0)),
                ],
                out_specs=pl.BlockSpec((tile_r, HW), lambda i: (i, 0)),
            ),
            compiler_params=pltpu.CompilerParams(
                dimension_semantics=("parallel",),
                vmem_limit_bytes=vmem_limit),
        )(gb, x_flat)
        return out_flat.reshape(N, C, H, W)

    # ---------------- Path B: streamed two-pass over HW chunks --------------
    # Smallest legal row tile -> most row blocks for megacore sharding.
    tile_r = min(row_cands)
    per_elem_ws = 2 * in_bytes + 2 * out_bytes + 2 * 4
    fitting = [c for c in col_cands
               if tile_r * c * per_elem_ws <= vmem_budget_bytes]
    tile_c = max(fitting) if fitting else min(col_cands)
    n_chunks = HW // tile_c
    grid = (NC // tile_r, 2, n_chunks)

    out_flat = pl.pallas_call(
        functools.partial(_cin_kernel_two_pass,
                          tile_c=tile_c, hw=float(HW), n_chunks=n_chunks),
        out_shape=jax.ShapeDtypeStruct((NC, HW), x.dtype),
        grid_spec=pltpu.PrefetchScalarGridSpec(
            num_scalar_prefetch=0,
            grid=grid,
            in_specs=[
                pl.BlockSpec((tile_r, 2), lambda i, p, j: (i, 0)),
                pl.BlockSpec((tile_r, tile_c), lambda i, p, j: (i, j)),
            ],
            # Freeze the output block index during the stats pass (p == 0) so
            # Pallas never writes untouched blocks back to HBM.
            out_specs=pl.BlockSpec((tile_r, tile_c),
                                   lambda i, p, j: (i, j * p)),
            scratch_shapes=[
                pltpu.VMEM((tile_r, 1), jnp.float32),   # running mean -> scale
                pltpu.VMEM((tile_r, 1), jnp.float32),   # running M2   -> shift
            ],
        ),
        compiler_params=pltpu.CompilerParams(
            dimension_semantics=("parallel", "arbitrary", "arbitrary"),
            vmem_limit_bytes=vmem_limit_bytes),
    )(gb, x_flat)
    return out_flat.reshape(N, C, H, W)


# ---------------------------------------------------------------------------
# Pure-JAX reference (mirrors the PyTorch forward)
# ---------------------------------------------------------------------------

def _reference(x, t, emb_weight):
    N, C, H, W = x.shape
    mean = jnp.mean(x, axis=(2, 3), keepdims=True)
    var = jnp.var(x, axis=(2, 3), keepdims=True)          # biased, like torch
    out = (x - mean) / jnp.sqrt(var + EPS)
    emb = jnp.take(emb_weight, t, axis=0)
    gamma, beta = emb[:, :C], emb[:, C:]
    return gamma.reshape(N, C, 1, 1) * out + beta.reshape(N, C, 1, 1)


if __name__ == "__main__":
    num_embedding = 10
    key = jax.random.PRNGKey(0)
    kx, ke, kt = jax.random.split(key, 3)

    # --- Test 1: pipelined one-pass path (Path A, grid=(4,)) ---------------
    N1, C1, H1, W1 = 2, 16, 16, 16
    x1 = jax.random.normal(kx, (N1, C1, H1, W1), dtype=jnp.float32)
    w1 = 0.02 * jax.random.normal(ke, (num_embedding, 2 * C1), dtype=jnp.float32)
    t1 = jax.random.randint(kt, (N1,), 0, num_embedding, dtype=jnp.int32)
    o1 = jax.block_until_ready(conditional_instance_norm_2d(x1, t1, w1))
    r1 = _reference(x1, t1, w1)
    assert o1.shape == (N1, C1, H1, W1)
    assert jnp.allclose(o1, r1, atol=1e-5, rtol=1e-5), "Path A mismatch"

    # --- Test 2: force the streamed two-pass path with a tiny budget -------
    N2, C2, H2, W2 = 2, 16, 32, 32
    x2 = jax.random.normal(kx, (N2, C2, H2, W2), dtype=jnp.float32)
    w2 = 0.02 * jax.random.normal(ke, (num_embedding, 2 * C2), dtype=jnp.float32)
    t2 = jax.random.randint(kt, (N2,), 0, num_embedding, dtype=jnp.int32)
    o2 = jax.block_until_ready(
        conditional_instance_norm_2d(x2, t2, w2, vmem_budget_bytes=32 * 1024))
    r2 = _reference(x2, t2, w2)
    assert jnp.allclose(o2, r2, atol=1e-5, rtol=1e-5), "Path B mismatch"

    # --- Test 3: module-default small shape (N=2, C=4, 16x16) --------------
    # Small NC routes to the streamed path (never a serialized grid=(1,)).
    N3, C3, H3, W3 = 2, 4, 16, 16
    x3 = jax.random.normal(kx, (N3, C3, H3, W3), dtype=jnp.float32)
    w3 = 0.02 * jax.random.normal(ke, (num_embedding, 2 * C3), dtype=jnp.float32)
    t3 = jax.random.randint(kt, (N3,), 0, num_embedding, dtype=jnp.int32)
    o3 = jax.block_until_ready(conditional_instance_norm_2d(x3, t3, w3))
    r3 = _reference(x3, t3, w3)
    assert jnp.allclose(o3, r3, atol=1e-5, rtol=1e-5), "small-NC mismatch"

    print("KERNEL_OK")
</pallas_src>

<mosaic_0001>
module attributes {stable_mosaic.version = 11 : i64} {
  func.func @_cin_kernel_one_pass(%arg0: i32, %arg1: memref<8x2xf32, #tpu.memory_space<vmem>>, %arg2: memref<8x256xf32, #tpu.memory_space<vmem>>, %arg3: memref<8x256xf32, #tpu.memory_space<vmem>>) attributes {dimension_semantics = [#tpu.dimension_semantics<parallel>], iteration_bounds = array<i64: 4>, scalar_prefetch = 0 : i64, scratch_operands = 0 : i64, tpu.core_type = #tpu.core_type<tc>, window_params = [{transform_indices = @transform_0, window_bounds = array<i64: 8, 2>}, {transform_indices = @transform_1, window_bounds = array<i64: 8, 256>}, {transform_indices = @transform_2, window_bounds = array<i64: 8, 256>}]} {
    %c0 = arith.constant 0 : index
    %c0_0 = arith.constant 0 : index
    %0 = vector.load %arg1[%c0, %c0_0] : memref<8x2xf32, #tpu.memory_space<vmem>>, vector<8x2xf32>
    %1 = vector.extract_strided_slice %0 {offsets = [0, 0], sizes = [8, 1], strides = [1, 1]} : vector<8x2xf32> to vector<8x1xf32>
    %2 = vector.extract_strided_slice %0 {offsets = [0, 1], sizes = [8, 1], strides = [1, 1]} : vector<8x2xf32> to vector<8x1xf32>
    %c0_1 = arith.constant 0 : index
    %c0_2 = arith.constant 0 : index
    %3 = vector.load %arg2[%c0_1, %c0_2] : memref<8x256xf32, #tpu.memory_space<vmem>>, vector<8x256xf32>
    %cst = arith.constant dense<0.000000e+00> : vector<8xf32>
    %4 = vector.multi_reduction <add>, %3, %cst [1] : vector<8x256xf32> to vector<8xf32>
    %5 = vector.shape_cast %4 : vector<8xf32> to vector<8x1xf32>
    %cst_3 = arith.constant 2.560000e+02 : f32
    %6 = vector.broadcast %cst_3 : f32 to vector<8x1xf32>
    %7 = arith.divf %5, %6 : vector<8x1xf32>
    %8 = vector.broadcast %7 : vector<8x1xf32> to vector<8x256xf32>
    %9 = arith.subf %3, %8 : vector<8x256xf32>
    %10 = vector.broadcast %7 : vector<8x1xf32> to vector<8x256xf32>
    %11 = arith.subf %3, %10 : vector<8x256xf32>
    %12 = arith.mulf %9, %11 : vector<8x256xf32>
    %cst_4 = arith.constant dense<0.000000e+00> : vector<8xf32>
    %13 = vector.multi_reduction <add>, %12, %cst_4 [1] : vector<8x256xf32> to vector<8xf32>
    %14 = vector.shape_cast %13 : vector<8xf32> to vector<8x1xf32>
    %cst_5 = arith.constant 2.560000e+02 : f32
    %15 = vector.broadcast %cst_5 : f32 to vector<8x1xf32>
    %16 = arith.divf %14, %15 : vector<8x1xf32>
    %cst_6 = arith.constant 9.99999974E-6 : f32
    %17 = vector.broadcast %cst_6 : f32 to vector<8x1xf32>
    %18 = arith.addf %16, %17 : vector<8x1xf32>
    %19 = math.rsqrt %18 : vector<8x1xf32>
    %20 = arith.mulf %1, %19 : vector<8x1xf32>
    %21 = arith.mulf %7, %20 : vector<8x1xf32>
    %22 = arith.subf %2, %21 : vector<8x1xf32>
    %23 = vector.broadcast %20 : vector<8x1xf32> to vector<8x256xf32>
    %24 = arith.mulf %3, %23 : vector<8x256xf32>
    %25 = vector.broadcast %22 : vector<8x1xf32> to vector<8x256xf32>
    %26 = arith.addf %24, %25 : vector<8x256xf32>
    %c0_7 = arith.constant 0 : index
    %c0_8 = arith.constant 0 : index
    %27 = vector.load %arg3[%c0_7, %c0_8] : memref<8x256xf32, #tpu.memory_space<vmem>>, vector<8x256xf32>
    tpu.vector_store %arg3[%c0_7, %c0_8], %26 {strides = array<i32>} : memref<8x256xf32, #tpu.memory_space<vmem>>, vector<8x256xf32>,
    return
  }
  func.func @transform_0(%arg0: i32) -> (i32, i32) {
    %c0_i32 = arith.constant 0 : i32
    %c0_i32_0 = arith.constant 0 : i32
    return %arg0, %c0_i32 : i32, i32
  }
  func.func @transform_1(%arg0: i32) -> (i32, i32) {
    %c0_i32 = arith.constant 0 : i32
    %c0_i32_0 = arith.constant 0 : i32
    return %arg0, %c0_i32 : i32, i32
  }
  func.func @transform_2(%arg0: i32) -> (i32, i32) {
    %c0_i32 = arith.constant 0 : i32
    %c0_i32_0 = arith.constant 0 : i32
    return %arg0, %c0_i32 : i32, i32
  }
}

</mosaic_0001>

<llo_original>
// kernel: tpu_custom_call.1
$region0: #{tpu_custom_call.1}
  #allocation0 [shape = 'u32[]', space=smem, size = 0x4, offset = 0x4, fixed_abs, tag = 'smem constant byte address 0x4 - core index']
  #allocation1 [shape = 'u32[144,128]{1,0:T(1,128)}', space=vmem, size = 0x12000, scoped, tag = 'internal scratch']
  %s0 = inlined_call_operand.vmem [shape: f32[32,2], index: 0, kind: input, shape index: {}]
  %s1 = inlined_call_operand.hbm [shape: f32[32,256], index: 1, kind: input, shape index: {}]
  %s2 = inlined_call_operand.hbm [shape: f32[32,256], index: 2, kind: output, shape index: {}]
  %s3 = sld [smem:[#allocation0]]
  $region45: #{tpu_custom_call.1} parent=0
    _
  %s5 = ssub.s32 1, %s3
  %s6 = scalar_select 0, %s5, %s3
  $region1: #{tpu_custom_call.1} parent=0
    #allocation2 [shape = 'u8[16384]{0}', space=vmem, size = 0x4000, scoped, tag = 'input window, operand 1']
    #allocation3 [shape = 's32[2]{0}', space=sflag, size = 0x8, scoped, tag = 'scoped memory for tpu_custom_call.1']
    #allocation4 [shape = 's32[2]{0}', space=sflag, size = 0x8, scoped, tag = 'scoped memory for tpu_custom_call.1']
    #allocation5 [shape = 'u8[16384]{0}', space=vmem, size = 0x4000, scoped, tag = 'output window, operand 0']
    %7 = vsyncpa [#allocation3], 0
    %s8 = scalar_lea.sflag [#allocation3], 1
    %9 = vsyncpa %s8, 0
    %10 = vsyncpa [#allocation4], 0
    %s11 = scalar_lea.sflag [#allocation4], 1
    %12 = vsyncpa %s11, 0
    loop: start=0, step=1, limit=6
    $region2: #{tpu_custom_call.1} parent=1 // loop_pre_header
      _
    $region3: #{tpu_custom_call.1} parent=1 // loop_header
      %s14 = sphi 0, %s18
      %p15 = scmp.ge.s32.totalorder %s14, 6
      %s24 = sphi 0, %s26
      %s27 = sphi 0, %s24
      %s28 = sphi 0, %s27
      %s44 = sphi 0, %s28
      %s50 = sphi 0, %s52
      %s53 = sphi 0, %s50
      %s54 = sphi 0, %s53
      %s70 = sphi 0, %s54
      %s76 = sphi 0, %s78
      %s79 = sphi 0, %s76
      %s80 = sphi 0, %s79
      %s96 = sphi 0, %s80
    $region4: #{tpu_custom_call.1} parent=1 // loop_header_branch
      %17 = sbr.rel (%p15) target = $region8
    $region5: #{tpu_custom_call.1} parent=1 // loop_body
      %s19 = ssub.s32 %s14, 1
      %s20 = ssub.s32 %s14, 2
      %s21 = sadd.s32 %s14, 1
      %s22 = ssub.s32 %s14, %s21
      %p23 = scmp.eq.s32.totalorder %s22, 0
      %s25 = sadd.s32 %s24, 1
      %s26 = scalar_select %p23, %s24, %s25
      %p29 = pneg %p23
      %p30 = scmp.eq.s32.totalorder %s14, 3
      %p31 = por %p29, %p30
      %p32 = scmp.ne.s32.totalorder %s24, %s27
      %p33 = scmp.eq.s32.totalorder %s14, 0
      %p34 = por %p32, %p33
      %p35 = scmp.ne.s32.totalorder %s24, %s27
      %p36 = scmp.eq.s32.totalorder %s19, 3
      %p37 = por %p35, %p36
      %p38 = scmp.ne.s32.totalorder %s27, %s28
      %p39 = scmp.eq.s32.totalorder %s19, 0
      %p40 = por %p38, %p39
      %p41 = scmp.ne.s32.totalorder %s27, %s28
      %p42 = scmp.eq.s32.totalorder %s20, 3
      %p43 = por %p41, %p42
      %p45 = scmp.ne.s32.totalorder %s28, %s44
      %p46 = scmp.eq.s32.totalorder %s20, 0
      %p47 = por %p45, %p46
      %s48 = ssub.s32 %s14, %s21
      %p49 = scmp.eq.s32.totalorder %s48, 0
      %s51 = sadd.s32 %s50, 1
      %s52 = scalar_select %p49, %s50, %s51
      %p55 = pneg %p49
      %p56 = scmp.eq.s32.totalorder %s14, 3
      %p57 = por %p55, %p56
      %p58 = scmp.ne.s32.totalorder %s50, %s53
      %p59 = scmp.eq.s32.totalorder %s14, 0
      %p60 = por %p58, %p59
      %p61 = scmp.ne.s32.totalorder %s50, %s53
      %p62 = scmp.eq.s32.totalorder %s19, 3
      %p63 = por %p61, %p62
      %p64 = scmp.ne.s32.totalorder %s53, %s54
      %p65 = scmp.eq.s32.totalorder %s19, 0
      %p66 = por %p64, %p65
      %p67 = scmp.ne.s32.totalorder %s53, %s54
      %p68 = scmp.eq.s32.totalorder %s20, 3
      %p69 = por %p67, %p68
      %p71 = scmp.ne.s32.totalorder %s54, %s70
      %p72 = scmp.eq.s32.totalorder %s20, 0
      %p73 = por %p71, %p72
      %s74 = ssub.s32 %s14, %s21
      %p75 = scmp.eq.s32.totalorder %s74, 0
      %s77 = sadd.s32 %s76, 1
      %s78 = scalar_select %p75, %s76, %s77
      %p81 = pneg %p75
      %p82 = scmp.eq.s32.totalorder %s14, 3
      %p83 = por %p81, %p82
      %p84 = scmp.ne.s32.totalorder %s76, %s79
      %p85 = scmp.eq.s32.totalorder %s14, 0
      %p86 = por %p84, %p85
      %p87 = scmp.ne.s32.totalorder %s76, %s79
      %p88 = scmp.eq.s32.totalorder %s19, 3
      %p89 = por %p87, %p88
      %p90 = scmp.ne.s32.totalorder %s79, %s80
      %p91 = scmp.eq.s32.totalorder %s19, 0
      %p92 = por %p90, %p91
      %p93 = scmp.ne.s32.totalorder %s79, %s80
      %p94 = scmp.eq.s32.totalorder %s20, 3
      %p95 = por %p93, %p94
      %p97 = scmp.ne.s32.totalorder %s80, %s96
      %p98 = scmp.eq.s32.totalorder %s20, 0
      %p99 = por %p97, %p98
      %p100 = scmp.le.s32.totalorder 1, %s14
      %p101 = scmp.lt.s32.totalorder %s14, 5
      %p102 = pnand %p100, %p101
      %p103 = pneg %p102
      // Predicated region
      $region9: #{tpu_custom_call.1} parent=5 // pred_check
        _
      $region10: #{tpu_custom_call.1} parent=5 // pred_check_branch
        %105 = sbr.rel (%p102) target = $region12
      $region11: #{tpu_custom_call.1} parent=5 // pred_region
        %s106 = ssub.s32 %s14, 1
      $region12: #{tpu_custom_call.1} parent=5 // pred_fallthru
        _
      %p107 = scmp.lt.s32.totalorder %s14, 4
      // Predicated region
      $region13: #{tpu_custom_call.1} parent=5 // pred_check
        %p108 = pneg %p107
      $region14: #{tpu_custom_call.1} parent=5 // pred_check_branch
        %110 = sbr.rel (%p108) target = $region16
      $region15: #{tpu_custom_call.1} parent=5 // pred_region
        // Predicated region
        $region17: #{tpu_custom_call.1} parent=15 // pred_check
          %p111 = pneg %p34
        $region18: #{tpu_custom_call.1} parent=15 // pred_check_branch
          %113 = sbr.rel (%p111) target = $region20
        $region19: #{tpu_custom_call.1} parent=15 // pred_region
          %p114 = scmp.lt.s32.totalorder %s14, 3
          %s115 = scalar_select %p114, %s14, 3
          %s116 = smul.addr %s115, 8
          %s117 = scalar_lea.vmem %s0, %s116
        $region20: #{tpu_custom_call.1} parent=15 // pred_fallthru
          _
        // Predicated region
        $region21: #{tpu_custom_call.1} parent=15 // pred_check
          %p118 = pneg %p60
        $region22: #{tpu_custom_call.1} parent=15 // pred_check_branch
          %120 = sbr.rel (%p118) target = $region24
        $region23: #{tpu_custom_call.1} parent=15 // pred_region
          %s121 = sand.u32 %s50, 1
          %s122 = scalar_lea.sflag [#allocation3], %s121
          %s123 = sand.u32 %s50, 1
          %s124 = smul.addr %s123, 16
          %s125 = scalar_lea.vmem [#allocation2], %s124
          %s127 = ssub.s32 256, 256
          %128 = vsyncadd %s122, %s127
          %s129 = smul.addr %s14, 2
          %s130 = smul.addr %s129, 128
          %s131 = scalar_lea.hbm %s1, %s130
          %s133 = sshll.u32 %s125, 4
          %s134 = int_to_ptr.vmem [resolvable:$true] %s133
          %136 = dma.hbm_to_vmem [thread:$0]  %s131, 256, %s134, %s122
        $region24: #{tpu_custom_call.1} parent=15 // pred_fallthru
          _
      $region16: #{tpu_custom_call.1} parent=5 // pred_fallthru
        _
      %p137 = scmp.le.s32.totalorder 1, %s14
      %p138 = scmp.lt.s32.totalorder %s14, 5
      %p139 = pnand %p137, %p138
      %p140 = pneg %p139
      // Predicated region
      $region25: #{tpu_custom_call.1} parent=5 // pred_check
        _
      $region26: #{tpu_custom_call.1} parent=5 // pred_check_branch
        %142 = sbr.rel (%p139) target = $region28
      $region27: #{tpu_custom_call.1} parent=5 // pred_region
        %s143 = ssub.s32 %s14, 1
        %s144 = sand.u32 %s53, 1
        %s145 = scalar_lea.sflag [#allocation3], %s144
        %s146 = sand.u32 %s53, 1
        %s147 = smul.addr %s146, 16
        %s148 = scalar_lea.vmem [#allocation2], %s147
        // Predicated region
        $region29: #{tpu_custom_call.1} parent=27 // pred_check
          %p149 = pneg %p66
        $region30: #{tpu_custom_call.1} parent=27 // pred_check_branch
          %151 = sbr.rel (%p149) target = $region32
        $region31: #{tpu_custom_call.1} parent=27 // pred_region
          %152 = dma.done %s145, 256
        $region32: #{tpu_custom_call.1} parent=27 // pred_fallthru
          _
        %p153 = scmp.lt.s32.totalorder %s19, 3
        %s154 = scalar_select %p153, %s19, 3
        %s155 = smul.addr %s154, 8
        %s156 = scalar_lea.vmem %s0, %s155
        %p157 = pneg %p40
        %p158 = pneg %p37
        %s159 = sand.u32 %s53, 1
        %s160 = scalar_lea.sflag [#allocation3], %s159
        %s161 = sand.u32 %s53, 1
        %s162 = smul.addr %s161, 16
        %s163 = scalar_lea.vmem [#allocation2], %s162
        %p164 = pneg %p66
        %p165 = pneg %p63
        %p166 = pneg %p92
        %p167 = pneg %p89
        %s168 = sand.u32 %s79, 1
        %s169 = scalar_lea.sflag [#allocation4], %s168
        %s170 = sand.u32 %s79, 1
        %s171 = smul.addr %s170, 16
        %s172 = scalar_lea.vmem [#allocation5], %s171
        %p173 = scmp.lt.s32.totalorder %s19, 3
        %s174 = scalar_select %p173, %s19, 3
        %s175 = smul.addr %s174, 8
        %s176 = scalar_lea.vmem %s0, %s175
        %v177 = vld [vmem:[%s176] sm:$0xff]
        %v178 = vld [vmem:[%s148] sm:$0xff]
        %v179 = vld [vmem:[%s148 + $0x8] sm:$0xff]
        %v180 = vadd.f32 %v178, %v179
        %181 = vadd.xlane.f32.xlu0 %v180
        %v182 = vpop.xlane.xlu0 %181
        %v183 = vrcp.pop 256.0
        %v184 = vmul.f32 %v182, %v183
        %v185 = vsub.f32 %v178, %v184
        %v186 = vsub.f32 %v179, %v184
        %v187 = vmul.f32 %v185, %v185
        %v188 = vmul.f32 %v186, %v186
        %v189 = vadd.f32 %v187, %v188
        %190 = vadd.xlane.f32.xlu0 %v189
        %v191 = vpop.xlane.xlu0 %190
        %v192 = vmul.f32 %v191, %v183
        %v193 = vadd.f32 %v192, 1e-05
        %v194 = vrsqrt.pop %v193
        %v195 = vmul.f32 %v177, %v194
        %v196 = vmul.f32 %v184, %v195
        %198 = vrot.lane.b32.xlu0 %v196, 1
        %v199 = vpop.permute.xlu0 %198
        %v201 = vsub.f32 %v177, %v199
        %203 = vset.pattern.permute.xlu0 0
        %204 = vperm.xlu0 %203, %v195
        %v205 = vpop.permute.xlu0 %204
        %v207 = vmul.f32 %v178, %v205
        %v208 = vmul.f32 %v179, %v205
        %210 = vset.pattern.permute.xlu0 1
        %211 = vperm.xlu0 %210, %v201
        %v212 = vpop.permute.xlu0 %211
        %v214 = vadd.f32 %v207, %v212
        %v215 = vadd.f32 %v208, %v212
        %216 = vst [vmem:[%s172] sm:$0xff] %v214
        %217 = vst [vmem:[%s172 + $0x8] sm:$0xff] %v215
        %s218 = sand.u32 %s79, 1
        %s219 = scalar_lea.sflag [#allocation4], %s218
        %s220 = sand.u32 %s79, 1
        %s221 = smul.addr %s220, 16
        %s222 = scalar_lea.vmem [#allocation5], %s221
        // Predicated region
        $region33: #{tpu_custom_call.1} parent=27 // pred_check
          %p223 = pneg %p89
        $region34: #{tpu_custom_call.1} parent=27 // pred_check_branch
          %225 = sbr.rel (%p223) target = $region36
        $region35: #{tpu_custom_call.1} parent=27 // pred_region
          %s227 = ssub.s32 256, 256
          %228 = vsyncadd %s219, %s227
          %s229 = smul.addr %s19, 2
          %s230 = smul.addr %s229, 128
          %s231 = scalar_lea.hbm %s2, %s230
          %s233 = sshll.u32 %s222, 4
          %s234 = int_to_ptr.vmem [resolvable:$true] %s233
          %236 = dma.vmem_to_hbm [thread:$0]  %s234, 256, %s231, %s219
        $region36: #{tpu_custom_call.1} parent=27 // pred_fallthru
          _
      $region28: #{tpu_custom_call.1} parent=5 // pred_fallthru
        _
      %p237 = scmp.le.s32.totalorder 2, %s14
      // Predicated region
      $region37: #{tpu_custom_call.1} parent=5 // pred_check
        %p238 = pneg %p237
      $region38: #{tpu_custom_call.1} parent=5 // pred_check_branch
        %240 = sbr.rel (%p238) target = $region40
      $region39: #{tpu_custom_call.1} parent=5 // pred_region
        %s241 = ssub.s32 %s14, 2
        // Predicated region
        $region41: #{tpu_custom_call.1} parent=39 // pred_check
          %p242 = pneg %p95
        $region42: #{tpu_custom_call.1} parent=39 // pred_check_branch
          %244 = sbr.rel (%p242) target = $region44
        $region43: #{tpu_custom_call.1} parent=39 // pred_region
          %s245 = sand.u32 %s80, 1
          %s246 = scalar_lea.sflag [#allocation4], %s245
          %s247 = sand.u32 %s80, 1
          %s248 = smul.addr %s247, 16
          %s249 = scalar_lea.vmem [#allocation5], %s248
          %250 = dma.done %s246, 256
        $region44: #{tpu_custom_call.1} parent=39 // pred_fallthru
          _
      $region40: #{tpu_custom_call.1} parent=5 // pred_fallthru
        _
    $region6: #{tpu_custom_call.1} parent=1 // loop_footer
      %s18 = sadd.s32 1, %s14
    $region7: #{tpu_custom_call.1} parent=1 // loop_footer_branch
      %13 = sbr.rel target = $region3
    $region8: #{tpu_custom_call.1} parent=1 // loop_exit
      _
    %251 = vsyncpa [#allocation3], 1
    %s252 = scalar_lea.sflag [#allocation3], 1
    %253 = vsyncpa %s252, 1
    %254 = vsyncpa [#allocation4], 1
    %s255 = scalar_lea.sflag [#allocation4], 1
    %256 = vsyncpa %s255, 1

</llo_original>
